<compile_context>
chip_gen: v7x
topology: tpu7x:2x2x1
jax: 0.10.0
libtpu: 0.0.40
codegen_flags: <defaults>
</compile_context>

<pallas_src>
import functools

import numpy as np
import jax
import jax.numpy as jnp
from jax.experimental import pallas as pl
from jax.experimental.pallas import tpu as pltpu


# ----------------------------------------------------------------------------
# Kernels: one grid step = one (batch, row-tile) slice.
#   input  block: (1, C, T)  -- channels-major, as in the NCHW input
#   output block: (1, T, C)  -- tokens-major, full C on the lane axis
# The tile is processed in `chunk`-row slabs so vreg live ranges stay bounded
# even for large T.
# ----------------------------------------------------------------------------
def _relayout_kernel(x_ref, o_ref, *, chunk):
    """norm_layer=None: pure (C, T) -> (T, C) relayout, slab-by-slab stores."""
    T = o_ref.shape[1]
    n = T // chunk

    def body(i, carry):
        s = pl.multiple_of(i * chunk, chunk)
        xt = x_ref[0, :, pl.ds(s, chunk)]                   # (C, chunk), src dtype
        o_ref[0, pl.ds(s, chunk), :] = xt.T.astype(o_ref.dtype)
        return carry

    jax.lax.fori_loop(0, n, body, 0, unroll=(n <= 8))


def _relayout_norm_kernel(x_ref, gamma_ref, beta_ref, o_ref, *, eps, chunk):
    """norm_layer=nn.LayerNorm(embed_dim): fused relayout + LayerNorm over C."""
    T, C = o_ref.shape[1], o_ref.shape[2]
    n = T // chunk

    gamma = gamma_ref[0]                                     # (C,) f32, loaded once
    beta = beta_ref[0]                                       # (C,) f32
    # Resident ones matrix: row reductions become MXU matmuls; column 0 of the
    # lane-aligned (chunk, 128) result is the row sum.
    ones_c = jnp.ones((C, 128), jnp.float32)
    inv_c = jnp.float32(1.0 / C)

    def body(i, carry):
        s = pl.multiple_of(i * chunk, chunk)
        xt = x_ref[0, :, pl.ds(s, chunk)].T.astype(jnp.float32)          # (chunk, C)
        row_sum = jnp.dot(xt, ones_c, preferred_element_type=jnp.float32)[:, :1]
        mean = row_sum * inv_c                                           # (chunk, 1)
        xc = xt - mean
        sq_sum = jnp.dot(xc * xc, ones_c, preferred_element_type=jnp.float32)[:, :1]
        inv = jax.lax.rsqrt(sq_sum * inv_c + eps)                        # EUP slot
        y = xc * inv * gamma + beta
        o_ref[0, pl.ds(s, chunk), :] = y.astype(o_ref.dtype)
        return carry

    jax.lax.fori_loop(0, n, body, 0, unroll=(n <= 8))


# ----------------------------------------------------------------------------
# Tile selection: budget-driven, lane-aligned, v7x-aware.
# ----------------------------------------------------------------------------
def _pick_row_tile(L, C, itemsize, B, *, target_step_bytes=4 << 20,
                   vmem_step_cap=8 << 20, max_tile=4096):
    """Row tile T (multiple of 128) sized from an HBM-traffic / VMEM budget."""
    if L < 128:
        return int(L)                       # tiny full-extent block is legal & cheap
    per_row = 2 * C * itemsize              # HBM bytes per output row (in + out)
    t = (target_step_bytes // per_row) // 128 * 128
    t = max(128, min(t, max_tile))
    # Double-buffered in+out blocks must fit comfortably in scoped VMEM
    # (v7x: 32 MiB default scoped / 64 MiB physical).
    while t > 128 and 2 * t * per_row > vmem_step_cap:
        t -= 128
    # Never exceed the (lane-padded) row extent.
    t = min(t, pl.cdiv(L, 128) * 128)
    # Keep >=4 parallel grid steps so both v7x TensorCores get work.
    while t > 128 and B * pl.cdiv(L, t) < 4:
        t = max(128, (t // 2) // 128 * 128)
    return int(t)


# ----------------------------------------------------------------------------
# Wrapper
# ----------------------------------------------------------------------------
def patch_embed(x, gamma=None, beta=None, *, eps=1e-5, use_xla_relayout=False):
    """PatchEmbed.forward.

    x:           (B, C, *spatial)
    gamma/beta:  optional (C,) LayerNorm affine params (norm_layer=nn.LayerNorm).
    returns      (B, prod(spatial), C)
    """
    B, C = x.shape[0], x.shape[1]
    L = int(np.prod(x.shape[2:]))
    xf = x.reshape(B, C, L)                                  # free reshape (contiguous)

    if gamma is None and use_xla_relayout:
        # Pure HBM->HBM relayout: XLA's transpose copy is already near the HBM
        # roofline; the Pallas kernel's value is the fused-LayerNorm path.
        return jnp.transpose(xf, (0, 2, 1))

    T = _pick_row_tile(L, C, x.dtype.itemsize, B)
    chunk = T if T < 128 else 128
    nt = pl.cdiv(L, T)
    grid = (B, nt)

    x_spec = pl.BlockSpec((1, C, T), lambda b, t: (b, 0, t))
    o_spec = pl.BlockSpec((1, T, C), lambda b, t: (b, t, 0))
    out_shape = jax.ShapeDtypeStruct((B, L, C), x.dtype)

    in_bytes = C * T * x.dtype.itemsize
    out_bytes = T * C * x.dtype.itemsize
    need = 3 * (in_bytes + out_bytes) + (4 << 20)
    vmem_limit = int(min(max(need, 16 << 20), 32 << 20))     # safe on v5e/v6e/v7x
    cp = pltpu.CompilerParams(
        dimension_semantics=("parallel", "parallel"),
        vmem_limit_bytes=vmem_limit,
    )

    if gamma is None:
        # norm_layer=None: no gamma/beta operands at all.
        return pl.pallas_call(
            functools.partial(_relayout_kernel, chunk=chunk),
            out_shape=out_shape,
            grid_spec=pltpu.PrefetchScalarGridSpec(
                num_scalar_prefetch=0,
                grid=grid,
                in_specs=[x_spec],
                out_specs=o_spec,
            ),
            compiler_params=cp,
        )(xf)

    # Pre-cast affine params to f32 in the wrapper (no per-step casts in-kernel).
    gamma2 = jnp.asarray(gamma, jnp.float32).reshape(1, C)
    beta2 = jnp.asarray(beta, jnp.float32).reshape(1, C)
    return pl.pallas_call(
        functools.partial(_relayout_norm_kernel, eps=eps, chunk=chunk),
        out_shape=out_shape,
        grid_spec=pltpu.PrefetchScalarGridSpec(
            num_scalar_prefetch=0,
            grid=grid,
            in_specs=[
                x_spec,
                pl.BlockSpec((1, C), lambda b, t: (0, 0)),   # gamma (resident)
                pl.BlockSpec((1, C), lambda b, t: (0, 0)),   # beta  (resident)
            ],
            out_specs=o_spec,
        ),
        compiler_params=cp,
    )(xf, gamma2, beta2)


# ----------------------------------------------------------------------------
# Pure-JAX reference (mirrors the PyTorch forward)
# ----------------------------------------------------------------------------
def reference_forward(x, gamma=None, beta=None, eps=1e-5):
    B, C = x.shape[0], x.shape[1]
    L = int(np.prod(x.shape[2:]))
    y = jnp.transpose(x.reshape(B, C, L), (0, 2, 1))         # b c ... -> b (...) c
    if gamma is not None:
        mean = jnp.mean(y, axis=-1, keepdims=True)
        var = jnp.mean((y - mean) ** 2, axis=-1, keepdims=True)
        y = (y - mean) / jnp.sqrt(var + eps) * gamma + beta
    return y


# ----------------------------------------------------------------------------
if __name__ == "__main__":
    key = jax.random.PRNGKey(0)
    k0, k1, k2, k3, k4 = jax.random.split(key, 5)

    # Case 1: default module (norm_layer=None), SwinIR default embed_dim=96.
    B, C, H, W = 2, 96, 16, 16
    x = jax.random.normal(k0, (B, C, H, W), dtype=jnp.float32)
    out = jax.block_until_ready(patch_embed(x))
    ref = reference_forward(x)
    assert out.shape == (B, H * W, C)
    assert jnp.allclose(out, ref, atol=1e-6, rtol=1e-6), (
        float(jnp.max(jnp.abs(out - ref)))
    )

    # Case 2: norm_layer=nn.LayerNorm(embed_dim), L=324 (not a multiple of 128)
    # exercises the cdiv grid + masked tail block.
    gamma = 1.0 + 0.05 * jax.random.normal(k1, (C,), jnp.float32)
    beta = 0.02 * jax.random.normal(k2, (C,), jnp.float32)
    x2 = jax.random.normal(k3, (B, C, 18, 18), dtype=jnp.float32)
    out2 = jax.block_until_ready(patch_embed(x2, gamma, beta))
    ref2 = reference_forward(x2, gamma, beta)
    assert out2.shape == (B, 18 * 18, C)
    assert jnp.allclose(out2, ref2, atol=1e-4, rtol=1e-4), (
        float(jnp.max(jnp.abs(out2 - ref2)))
    )

    # Case 3: larger L with B=1 -> bigger row tile, exercises the chunked
    # (multi-slab) inner loop of the fused LayerNorm kernel.
    x3 = jax.random.normal(k4, (1, C, 64, 64), dtype=jnp.float32)
    out3 = jax.block_until_ready(patch_embed(x3, gamma, beta))
    ref3 = reference_forward(x3, gamma, beta)
    assert jnp.allclose(out3, ref3, atol=1e-4, rtol=1e-4), (
        float(jnp.max(jnp.abs(out3 - ref3)))
    )

    print("KERNEL_OK")
</pallas_src>

<mosaic_0001>
module attributes {stable_mosaic.version = 11 : i64} {
  func.func @_relayout_kernel(%arg0: i32, %arg1: i32, %arg2: memref<1x96x128xf32, #tpu.memory_space<vmem>>, %arg3: memref<1x128x96xf32, #tpu.memory_space<vmem>>) attributes {dimension_semantics = [#tpu.dimension_semantics<parallel>, #tpu.dimension_semantics<parallel>], iteration_bounds = array<i64: 2, 2>, scalar_prefetch = 0 : i64, scratch_operands = 0 : i64, tpu.core_type = #tpu.core_type<tc>, window_params = [{transform_indices = @transform_0, window_bounds = array<i64: 1, 96, 128>}, {transform_indices = @transform_1, window_bounds = array<i64: 1, 128, 96>}]} {
    %c0_i32 = arith.constant 0 : i32
    %c128_i32 = arith.constant 128 : i32
    %0 = arith.muli %c0_i32, %c128_i32 : i32
    %1 = tpu.assume_multiple %0, 128 : i32
    %c0 = arith.constant 0 : index
    %c0_0 = arith.constant 0 : index
    %2 = arith.index_cast %1 : i32 to index
    %3 = vector.load %arg2[%c0, %c0_0, %2] : memref<1x96x128xf32, #tpu.memory_space<vmem>>, vector<1x96x128xf32>
    %4 = vector.shape_cast %3 : vector<1x96x128xf32> to vector<96x128xf32>
    %5 = tpu.transpose %4, [1, 0] : vector<96x128xf32> -> vector<128x96xf32>
    %c0_1 = arith.constant 0 : index
    %6 = arith.index_cast %1 : i32 to index
    %c0_2 = arith.constant 0 : index
    %7 = vector.load %arg3[%c0_1, %6, %c0_2] : memref<1x128x96xf32, #tpu.memory_space<vmem>>, vector<1x128x96xf32>
    %8 = vector.shape_cast %7 : vector<1x128x96xf32> to vector<128x96xf32>
    %9 = vector.shape_cast %5 : vector<128x96xf32> to vector<1x128x96xf32>
    tpu.vector_store %arg3[%c0_1, %6, %c0_2], %9 {strides = array<i32>} : memref<1x128x96xf32, #tpu.memory_space<vmem>>, vector<1x128x96xf32>,
    %c1_i32 = arith.constant 1 : i32
    return
  }
  func.func @transform_0(%arg0: i32, %arg1: i32) -> (i32, i32, i32) {
    %c0_i32 = arith.constant 0 : i32
    %c0_i32_0 = arith.constant 0 : i32
    return %arg0, %c0_i32, %arg1 : i32, i32, i32
  }
  func.func @transform_1(%arg0: i32, %arg1: i32) -> (i32, i32, i32) {
    %c0_i32 = arith.constant 0 : i32
    %c0_i32_0 = arith.constant 0 : i32
    return %arg0, %arg1, %c0_i32 : i32, i32, i32
  }
}

</mosaic_0001>

<llo_original>
// kernel: tpu_custom_call.1
$region0: #{tpu_custom_call.1}
  #allocation0 [shape = 'u32[]', space=smem, size = 0x4, offset = 0x4, fixed_abs, tag = 'smem constant byte address 0x4 - core index']
  #allocation1 [shape = 'u32[144,128]{1,0:T(1,128)}', space=vmem, size = 0x12000, scoped, tag = 'internal scratch']
  %s0 = inlined_call_operand.hbm [shape: f32[2,96,256], index: 0, kind: input, shape index: {}]
  %s1 = inlined_call_operand.vmem [shape: f32[2,256,96], index: 1, kind: output, shape index: {}]
  %s2 = sld [smem:[#allocation0]]
  $region41: #{tpu_custom_call.1} parent=0
    _
  %s4 = ssub.s32 1, %s2
  %s5 = scalar_select 0, %s4, %s2
  $region1: #{tpu_custom_call.1} parent=0
    #allocation2 [shape = 'u8[98304]{0}', space=vmem, size = 0x18000, scoped, tag = 'input window, operand 0']
    #allocation3 [shape = 's32[2]{0}', space=sflag, size = 0x8, scoped, tag = 'scoped memory for tpu_custom_call.1']
    %6 = vsyncpa [#allocation3], 0
    %s7 = scalar_lea.sflag [#allocation3], 1
    %8 = vsyncpa %s7, 0
    loop: start=0, step=1, limit=6
    $region2: #{tpu_custom_call.1} parent=1 // loop_pre_header
      _
    $region3: #{tpu_custom_call.1} parent=1 // loop_header
      %s10 = sphi 0, %s14
      %p11 = scmp.ge.s32.totalorder %s10, 6
      %s17 = sphi 0, %s29
      %s18 = sphi 0, %s25
      %s19 = sphi 0, %s17
      %s20 = sphi 0, %s18
      %s21 = sphi 0, %s19
      %s22 = sphi 0, %s20
      %s34 = sphi 0, %s36
      %s37 = sphi 0, %s34
      %s38 = sphi 0, %s37
      %s54 = sphi 0, %s38
      %s62 = sphi 0, %s64
      %s65 = sphi 0, %s62
      %s66 = sphi 0, %s65
      %s82 = sphi 0, %s66
    $region4: #{tpu_custom_call.1} parent=1 // loop_header_branch
      %13 = sbr.rel (%p11) target = $region8
    $region5: #{tpu_custom_call.1} parent=1 // loop_body
      %s15 = ssub.s32 %s10, 1
      %s16 = ssub.s32 %s10, 2
      %s23 = sadd.s32 1, %s18
      %p24 = scmp.ge.s32.totalorder %s23, 2
      %s25 = scalar_select %p24, 0, %s23
      %s26 = sadd.s32 1, %s17
      %s27 = scalar_select %p24, %s26, %s17
      %p28 = scmp.ge.s32.totalorder %s27, 2
      %s29 = scalar_select %p28, 0, %s27
      %s30 = ssub.s32 %s17, %s29
      %s31 = ssub.s32 %s18, %s25
      %s32 = sor.u32 %s30, %s31
      %p33 = scmp.eq.s32.totalorder %s32, 0
      %s35 = sadd.s32 %s34, 1
      %s36 = scalar_select %p33, %s34, %s35
      %p39 = pneg %p33
      %p40 = scmp.eq.s32.totalorder %s10, 3
      %p41 = por %p39, %p40
      %p42 = scmp.ne.s32.totalorder %s34, %s37
      %p43 = scmp.eq.s32.totalorder %s10, 0
      %p44 = por %p42, %p43
      %p45 = scmp.ne.s32.totalorder %s34, %s37
      %p46 = scmp.eq.s32.totalorder %s15, 3
      %p47 = por %p45, %p46
      %p48 = scmp.ne.s32.totalorder %s37, %s38
      %p49 = scmp.eq.s32.totalorder %s15, 0
      %p50 = por %p48, %p49
      %p51 = scmp.ne.s32.totalorder %s37, %s38
      %p52 = scmp.eq.s32.totalorder %s16, 3
      %p53 = por %p51, %p52
      %p55 = scmp.ne.s32.totalorder %s38, %s54
      %p56 = scmp.eq.s32.totalorder %s16, 0
      %p57 = por %p55, %p56
      %s58 = ssub.s32 %s17, %s29
      %s59 = ssub.s32 %s18, %s25
      %s60 = sor.u32 %s58, %s59
      %p61 = scmp.eq.s32.totalorder %s60, 0
      %s63 = sadd.s32 %s62, 1
      %s64 = scalar_select %p61, %s62, %s63
      %p67 = pneg %p61
      %p68 = scmp.eq.s32.totalorder %s10, 3
      %p69 = por %p67, %p68
      %p70 = scmp.ne.s32.totalorder %s62, %s65
      %p71 = scmp.eq.s32.totalorder %s10, 0
      %p72 = por %p70, %p71
      %p73 = scmp.ne.s32.totalorder %s62, %s65
      %p74 = scmp.eq.s32.totalorder %s15, 3
      %p75 = por %p73, %p74
      %p76 = scmp.ne.s32.totalorder %s65, %s66
      %p77 = scmp.eq.s32.totalorder %s15, 0
      %p78 = por %p76, %p77
      %p79 = scmp.ne.s32.totalorder %s65, %s66
      %p80 = scmp.eq.s32.totalorder %s16, 3
      %p81 = por %p79, %p80
      %p83 = scmp.ne.s32.totalorder %s66, %s82
      %p84 = scmp.eq.s32.totalorder %s16, 0
      %p85 = por %p83, %p84
      %p86 = scmp.le.s32.totalorder 1, %s10
      %p87 = scmp.lt.s32.totalorder %s10, 5
      %p88 = pnand %p86, %p87
      %p89 = pneg %p88
      // Predicated region
      $region9: #{tpu_custom_call.1} parent=5 // pred_check
        _
      $region10: #{tpu_custom_call.1} parent=5 // pred_check_branch
        %91 = sbr.rel (%p88) target = $region12
      $region11: #{tpu_custom_call.1} parent=5 // pred_region
        %s92 = ssub.s32 %s10, 1
      $region12: #{tpu_custom_call.1} parent=5 // pred_fallthru
        _
      %p93 = scmp.lt.s32.totalorder %s10, 4
      // Predicated region
      $region13: #{tpu_custom_call.1} parent=5 // pred_check
        %p94 = pneg %p93
      $region14: #{tpu_custom_call.1} parent=5 // pred_check_branch
        %96 = sbr.rel (%p94) target = $region16
      $region15: #{tpu_custom_call.1} parent=5 // pred_region
        // Predicated region
        $region17: #{tpu_custom_call.1} parent=15 // pred_check
          %p97 = pneg %p44
        $region18: #{tpu_custom_call.1} parent=15 // pred_check_branch
          %99 = sbr.rel (%p97) target = $region20
        $region19: #{tpu_custom_call.1} parent=15 // pred_region
          %s100 = sand.u32 %s34, 1
          %s101 = scalar_lea.sflag [#allocation3], %s100
          %s102 = sand.u32 %s34, 1
          %s103 = smul.addr %s102, 96
          %s104 = scalar_lea.vmem [#allocation2], %s103
          %s106 = ssub.s32 1536, 1536
          %107 = vsyncadd %s101, %s106
          %s108 = smul.addr %s17, 24
          %s109 = sadd.s32 %s18, %s108
          %s110 = smul.addr %s109, 128
          %s111 = scalar_lea.hbm %s0, %s110
          %s112 = sshll.u32 %s104, 4
          %s113 = int_to_ptr.vmem [resolvable:$true] %s112
          %118 = dma.hbm_to_vmem [thread:$0]  %s111, 1536, %s113, %s101, 256, 128, 8
        $region20: #{tpu_custom_call.1} parent=15 // pred_fallthru
          _
      $region16: #{tpu_custom_call.1} parent=5 // pred_fallthru
        _
      %p119 = scmp.le.s32.totalorder 1, %s10
      %p120 = scmp.lt.s32.totalorder %s10, 5
      %p121 = pnand %p119, %p120
      %p122 = pneg %p121
      // Predicated region
      $region21: #{tpu_custom_call.1} parent=5 // pred_check
        _
      $region22: #{tpu_custom_call.1} parent=5 // pred_check_branch
        %124 = sbr.rel (%p121) target = $region24
      $region23: #{tpu_custom_call.1} parent=5 // pred_region
        %s125 = ssub.s32 %s10, 1
        %s126 = sand.u32 %s37, 1
        %s127 = scalar_lea.sflag [#allocation3], %s126
        %s128 = sand.u32 %s37, 1
        %s129 = smul.addr %s128, 96
        %s130 = scalar_lea.vmem [#allocation2], %s129
        // Predicated region
        $region25: #{tpu_custom_call.1} parent=23 // pred_check
          %p131 = pneg %p50
        $region26: #{tpu_custom_call.1} parent=23 // pred_check_branch
          %133 = sbr.rel (%p131) target = $region28
        $region27: #{tpu_custom_call.1} parent=23 // pred_region
          %134 = dma.done %s127, 1536
        $region28: #{tpu_custom_call.1} parent=23 // pred_fallthru
          _
        %s135 = sand.u32 %s37, 1
        %s136 = scalar_lea.sflag [#allocation3], %s135
        %s137 = sand.u32 %s37, 1
        %s138 = smul.addr %s137, 96
        %s139 = scalar_lea.vmem [#allocation2], %s138
        %p140 = pneg %p50
        %p141 = pneg %p47
        %p142 = pneg %p78
        %p143 = pneg %p75
        %s144 = smul.u32 16, %s20
        %p145 = scmp.lt.s32.totalorder %s19, 1
        %s146 = scalar_select %p145, %s19, 1
        %p147 = scmp.lt.s32.totalorder %s144, 31
        %s148 = scalar_select %p147, %s144, 31
        %s149 = smul.addr %s146, 32
        %s150 = sadd.s32 %s148, %s149
        %s151 = smul.addr %s150, 8
        %s152 = scalar_lea.vmem %s1, %s151
        %s153 = smul.u32 16, %s20
        %p154 = scmp.lt.s32.totalorder %s19, 1
        %s155 = scalar_select %p154, %s19, 1
        %p156 = scmp.lt.s32.totalorder %s153, 31
        %s157 = scalar_select %p156, %s153, 31
        %s158 = smul.addr %s155, 32
        %s159 = sadd.s32 %s157, %s158
        %s160 = smul.addr %s159, 8
        %s161 = scalar_lea.vmem %s1, %s160
        %s162 = smul.u32 16, %s20
        %v163 = vld [vmem:[%s130] sm:$0xff]
        %v164 = vld [vmem:[%s130 + $0x8] sm:$0xff]
        %v165 = vld [vmem:[%s130 + $0x10] sm:$0xff]
        %v166 = vld [vmem:[%s130 + $0x18] sm:$0xff]
        %v167 = vld [vmem:[%s130 + $0x20] sm:$0xff]
        %v168 = vld [vmem:[%s130 + $0x28] sm:$0xff]
        %v169 = vld [vmem:[%s130 + $0x30] sm:$0xff]
        %v170 = vld [vmem:[%s130 + $0x38] sm:$0xff]
        %v171 = vld [vmem:[%s130 + $0x40] sm:$0xff]
        %v172 = vld [vmem:[%s130 + $0x48] sm:$0xff]
        %v173 = vld [vmem:[%s130 + $0x50] sm:$0xff]
        %v174 = vld [vmem:[%s130 + $0x58] sm:$0xff]
        %175 = vxpose.xlu0.b32.start [1/16] %v163, 128
        %176 = vxpose.xlu0.b32.cont [2/16] %v164, 128
        %177 = vxpose.xlu0.b32.cont [3/16] %v165, 128
        %178 = vxpose.xlu0.b32.cont [4/16] %v166, 128
        %179 = vxpose.xlu0.b32.cont [5/16] %v167, 128
        %180 = vxpose.xlu0.b32.cont [6/16] %v168, 128
        %181 = vxpose.xlu0.b32.cont [7/16] %v169, 128
        %182 = vxpose.xlu0.b32.cont [8/16] %v170, 128
        %183 = vxpose.xlu0.b32.cont [9/16] %v171, 128
        %184 = vxpose.xlu0.b32.cont [10/16] %v172, 128
        %185 = vxpose.xlu0.b32.cont [11/16] %v173, 128
        %186 = vxpose.xlu0.b32.cont [12/16] %v174, 128
        %187 = vxpose.xlu0.b32.cont [13/16] 0.0, 128
        %188 = vxpose.xlu0.b32.cont [14/16] 0.0, 128
        %189 = vxpose.xlu0.b32.cont [15/16] 0.0, 128
        %190 = vxpose.xlu0.b32.end [16/16] 0.0, 128
        %v191 = vpop.trf.xlu0
        %v192 = vpop.trf.xlu0
        %v193 = vpop.trf.xlu0
        %v194 = vpop.trf.xlu0
        %v195 = vpop.trf.xlu0
        %v196 = vpop.trf.xlu0
        %v197 = vpop.trf.xlu0
        %v198 = vpop.trf.xlu0
        %v199 = vpop.trf.xlu0
        %v200 = vpop.trf.xlu0
        %v201 = vpop.trf.xlu0
        %v202 = vpop.trf.xlu0
        %v203 = vpop.trf.xlu0
        %v204 = vpop.trf.xlu0
        %v205 = vpop.trf.xlu0
        %v206 = vpop.trf.xlu0
        %vm207 = vcmask 785408
        %208 = vst.msk [vmem:[%s161] sm:$0xff] %vm207, %v191
        %209 = vst.msk [vmem:[%s161 + $0x8] sm:$0xff] %vm207, %v192
        %210 = vst.msk [vmem:[%s161 + $0x10] sm:$0xff] %vm207, %v193
        %211 = vst.msk [vmem:[%s161 + $0x18] sm:$0xff] %vm207, %v194
        %212 = vst.msk [vmem:[%s161 + $0x20] sm:$0xff] %vm207, %v195
        %213 = vst.msk [vmem:[%s161 + $0x28] sm:$0xff] %vm207, %v196
        %214 = vst.msk [vmem:[%s161 + $0x30] sm:$0xff] %vm207, %v197
        %215 = vst.msk [vmem:[%s161 + $0x38] sm:$0xff] %vm207, %v198
        %216 = vst.msk [vmem:[%s161 + $0x40] sm:$0xff] %vm207, %v199
        %217 = vst.msk [vmem:[%s161 + $0x48] sm:$0xff] %vm207, %v200
        %218 = vst.msk [vmem:[%s161 + $0x50] sm:$0xff] %vm207, %v201
        %219 = vst.msk [vmem:[%s161 + $0x58] sm:$0xff] %vm207, %v202
        %220 = vst.msk [vmem:[%s161 + $0x60] sm:$0xff] %vm207, %v203
        %221 = vst.msk [vmem:[%s161 + $0x68] sm:$0xff] %vm207, %v204
        %222 = vst.msk [vmem:[%s161 + $0x70] sm:$0xff] %vm207, %v205
        %223 = vst.msk [vmem:[%s161 + $0x78] sm:$0xff] %vm207, %v206
        %s224 = smul.u32 16, %s20
        %p225 = scmp.lt.s32.totalorder %s19, 1
        %s226 = scalar_select %p225, %s19, 1
        %p227 = scmp.lt.s32.totalorder %s224, 31
        %s228 = scalar_select %p227, %s224, 31
        %s229 = smul.addr %s226, 32
        %s230 = sadd.s32 %s228, %s229
        %s231 = smul.addr %s230, 8
        %s232 = scalar_lea.vmem %s1, %s231
        // Predicated region
        $region29: #{tpu_custom_call.1} parent=23 // pred_check
          %p233 = pneg %p75
        $region30: #{tpu_custom_call.1} parent=23 // pred_check_branch
          %235 = sbr.rel (%p233) target = $region32
        $region31: #{tpu_custom_call.1} parent=23 // pred_region
          %s236 = smul.u32 16, %s20
        $region32: #{tpu_custom_call.1} parent=23 // pred_fallthru
          _
      $region24: #{tpu_custom_call.1} parent=5 // pred_fallthru
        _
      %p237 = scmp.le.s32.totalorder 2, %s10
      // Predicated region
      $region33: #{tpu_custom_call.1} parent=5 // pred_check
        %p238 = pneg %p237
      $region34: #{tpu_custom_call.1} parent=5 // pred_check_branch
        %240 = sbr.rel (%p238) target = $region36
      $region35: #{tpu_custom_call.1} parent=5 // pred_region
        %s241 = ssub.s32 %s10, 2
        // Predicated region
        $region37: #{tpu_custom_call.1} parent=35 // pred_check
          %p242 = pneg %p81
        $region38: #{tpu_custom_call.1} parent=35 // pred_check_branch
          %244 = sbr.rel (%p242) target = $region40
        $region39: #{tpu_custom_call.1} parent=35 // pred_region
          %s245 = smul.u32 16, %s22
          %p246 = scmp.lt.s32.totalorder %s21, 1
          %s247 = scalar_select %p246, %s21, 1
          %p248 = scmp.lt.s32.totalorder %s245, 31
          %s249 = scalar_select %p248, %s245, 31
          %s250 = smul.addr %s247, 32
          %s251 = sadd.s32 %s249, %s250
          %s252 = smul.addr %s251, 8
          %s253 = scalar_lea.vmem %s1, %s252
        $region40: #{tpu_custom_call.1} parent=35 // pred_fallthru
          _
      $region36: #{tpu_custom_call.1} parent=5 // pred_fallthru
        _
    $region6: #{tpu_custom_call.1} parent=1 // loop_footer
      %s14 = sadd.s32 1, %s10
    $region7: #{tpu_custom_call.1} parent=1 // loop_footer_branch
      %9 = sbr.rel target = $region3
    $region8: #{tpu_custom_call.1} parent=1 // loop_exit
      _
    %254 = vsyncpa [#allocation3], 1
    %s255 = scalar_lea.sflag [#allocation3], 1
    %256 = vsyncpa %s255, 1

</llo_original>
